<compile_context>
chip_gen: v6e
topology: v6e:2x2x1
jax: 0.10.0
libtpu: 0.0.40
codegen_flags: <defaults>
</compile_context>

<pallas_src>
import math

import jax
import jax.numpy as jnp
from jax.experimental import pallas as pl
from jax.experimental.pallas import tpu as pltpu


def _vmem_limit_bytes():
    """Generation-aware scoped-VMEM budget (falls back to a universally safe cap)."""
    try:
        cap = pltpu.get_tpu_info().vmem_capacity_bytes
        return int(min(cap * 3 // 4, 100 * 1024 * 1024))
    except Exception:
        return 48 * 1024 * 1024  # fits v7x's 64 MiB physical VMEM


def _make_kernel(bb, seq_len, extra):
    """Fused token-projection + epilogue + interp-fill kernel.

    Block shapes seen by the kernel:
      x_ref:      (bb*seq_len, K)   input dtype (cast to bf16 in-kernel)
      w_ref:      (K, tn)           input dtype (cast to bf16 in-kernel)
      b_ref:      (1, tn)           f32
      mod_ref:    (seq_len, tn)     f32
      interp_ref: (extra, tn)       f32   (only when extra > 0)
      o_ref:      (bb, p, tn)       out dtype
    """

    def kernel(x_ref, w_ref, b_ref, mod_ref, *rest):
        if extra > 0:
            interp_ref, o_ref = rest
        else:
            (o_ref,) = rest

        # Single MXU matmul over bb whole batches worth of rows (f32 accumulate).
        tok = jnp.dot(
            x_ref[...].astype(jnp.bfloat16),
            w_ref[...].astype(jnp.bfloat16),
            preferred_element_type=jnp.float32,
        )  # (bb*seq_len, tn)
        tn = tok.shape[-1]

        # (bb*seq_len, tn) -> (bb, seq_len, tn).  Clean relabel when
        # seq_len % 8 == 0 (the common case); otherwise Mosaic inserts a relayout.
        tok = tok.reshape(bb, seq_len, tn)
        tok = (tok + b_ref[...][None]) * mod_ref[...][None]

        # Token rows of the final output.
        o_ref[:, :seq_len, :] = tok.astype(o_ref.dtype)

        # Interp rows: single small broadcast write per output block.
        if extra > 0:
            o_ref[:, seq_len:, :] = jnp.broadcast_to(
                interp_ref[...][None], (bb, extra, tn)
            ).astype(o_ref.dtype)

    return kernel


def extended_mapping_a(x, w, b, modulation, interp_tokens):
    """x: (B, seq_len, input_dim) -> (B, p, hidden_dim).

    w is stored (input_dim, hidden_dim) so the kernel computes x @ w, matching
    PyTorch's x @ W.T for nn.Linear weight W of shape (hidden, input).
    """
    batch, seq_len, input_dim = x.shape
    hidden = w.shape[1]
    extra = interp_tokens.shape[0]
    p = seq_len + extra
    out_dtype = x.dtype

    # ---- N tile: lane-dense multiples of 128 when hidden allows, else full dim.
    if hidden % 512 == 0:
        tn = 512
    elif hidden % 256 == 0:
        tn = 256
    elif hidden % 128 == 0:
        tn = 128
    else:
        tn = hidden  # full-dim block is always legal
    n_blocks = -(-hidden // tn)

    # ---- M tile: bb whole batches.  bb*seq_len must be a multiple of 8
    # (sublane) by construction; target ~256 MXU rows, capped at batch coverage.
    g = math.gcd(seq_len, 8)
    bb_unit = 8 // g                                   # smallest bb with bb*seq % 8 == 0
    target_rows = 256
    reps = max(1, target_rows // (bb_unit * seq_len))
    reps = min(reps, -(-batch // bb_unit))             # cover the batch, no more
    bb = bb_unit * reps
    m_blocks = -(-batch // bb)
    # Keep both v7x TensorCores busy if the grid would otherwise be (1, 1).
    if m_blocks * n_blocks == 1 and batch >= 2 * bb_unit:
        bb = bb_unit * (-(-batch // (2 * bb_unit)))
        m_blocks = -(-batch // bb)
    tm = bb * seq_len

    # ---- inputs: no padding, no pre-cast -- only free reshapes.
    x2d = x.reshape(batch * seq_len, input_dim)
    b2d = b.reshape(1, hidden).astype(jnp.float32)
    mod = modulation.astype(jnp.float32)               # (seq_len, hidden)

    grid = (m_blocks, n_blocks)
    kernel = _make_kernel(bb, seq_len, extra)

    in_specs = [
        pl.BlockSpec((tm, input_dim), lambda mi, ni: (mi, 0)),   # x rows
        pl.BlockSpec((input_dim, tn), lambda mi, ni: (0, ni)),   # weight cols
        pl.BlockSpec((1, tn), lambda mi, ni: (0, ni)),           # bias
        pl.BlockSpec((seq_len, tn), lambda mi, ni: (0, ni)),     # modulation
    ]
    args = [x2d, w, b2d, mod]
    if extra > 0:
        in_specs.append(pl.BlockSpec((extra, tn), lambda mi, ni: (0, ni)))
        args.append(interp_tokens.astype(jnp.float32))

    cost = pl.CostEstimate(
        flops=2 * batch * seq_len * input_dim * hidden,
        transcendentals=0,
        bytes_accessed=(
            x2d.size * x2d.dtype.itemsize
            + m_blocks * w.size * w.dtype.itemsize
            + batch * p * hidden * jnp.dtype(out_dtype).itemsize
        ),
    )

    return pl.pallas_call(
        kernel,
        out_shape=jax.ShapeDtypeStruct((batch, p, hidden), out_dtype),
        grid_spec=pltpu.PrefetchScalarGridSpec(
            num_scalar_prefetch=0,
            grid=grid,
            in_specs=in_specs,
            out_specs=pl.BlockSpec((bb, p, tn), lambda mi, ni: (mi, 0, ni)),
        ),
        compiler_params=pltpu.CompilerParams(
            dimension_semantics=("parallel", "parallel"),
            vmem_limit_bytes=_vmem_limit_bytes(),
        ),
        cost_estimate=cost,
    )(*args)


def init_params(key, input_dim, hidden_dim, seq_len, p):
    """Deterministic parameter init mirroring the PyTorch module's shapes."""
    extra = p - seq_len
    k_w, k_b = jax.random.split(key, 2)
    bound = 1.0 / jnp.sqrt(jnp.float32(input_dim))
    # Stored as (input_dim, hidden_dim) so the kernel does x @ W (== x @ W_torch.T).
    w = jax.random.uniform(k_w, (input_dim, hidden_dim), jnp.float32,
                           minval=-bound, maxval=bound)
    b = jax.random.uniform(k_b, (hidden_dim,), jnp.float32,
                           minval=-bound, maxval=bound)
    modulation = jnp.ones((seq_len, hidden_dim), jnp.float32)
    interp = jnp.broadcast_to(
        jnp.linspace(-1.0, 1.0, extra, dtype=jnp.float32)[:, None],
        (extra, hidden_dim)).copy()
    return w, b, modulation, interp


if __name__ == "__main__":
    batch, input_dim, hidden_dim = 2, 16, 32
    seq_len, p = 8, 12

    key = jax.random.PRNGKey(0)
    k_x, k_p = jax.random.split(key)
    x = jax.random.normal(k_x, (batch, seq_len, input_dim), jnp.float32)
    w, b, modulation, interp = init_params(k_p, input_dim, hidden_dim, seq_len, p)

    out = extended_mapping_a(x, w, b, modulation, interp)
    out = jax.block_until_ready(out)

    # Pure-JAX reference (inputs rounded to bf16 to match the MXU input precision).
    xr = x.astype(jnp.bfloat16).astype(jnp.float32)
    wr = w.astype(jnp.bfloat16).astype(jnp.float32)
    ref_tokens = (xr @ wr + b) * modulation[None]
    ref = jnp.concatenate(
        [ref_tokens, jnp.broadcast_to(interp[None], (batch,) + interp.shape)],
        axis=1)
    assert out.shape == (batch, p, hidden_dim)
    assert jnp.allclose(out, ref, atol=1e-3, rtol=1e-3)

    print("KERNEL_OK")
</pallas_src>

<mosaic_0001>
module attributes {stable_mosaic.version = 11 : i64} {
  func.func @kernel(%arg0: i32, %arg1: i32, %arg2: memref<8x16xf32, #tpu.memory_space<vmem>>, %arg3: memref<16x32xf32, #tpu.memory_space<vmem>>, %arg4: memref<1x32xf32, #tpu.memory_space<vmem>>, %arg5: memref<8x32xf32, #tpu.memory_space<vmem>>, %arg6: memref<4x32xf32, #tpu.memory_space<vmem>>, %arg7: memref<1x12x32xf32, #tpu.memory_space<vmem>>) attributes {dimension_semantics = [#tpu.dimension_semantics<parallel>, #tpu.dimension_semantics<parallel>], iteration_bounds = array<i64: 2, 1>, scalar_prefetch = 0 : i64, scratch_operands = 0 : i64, tpu.core_type = #tpu.core_type<tc>, window_params = [{transform_indices = @transform_0, window_bounds = array<i64: 8, 16>}, {transform_indices = @transform_1, window_bounds = array<i64: 16, 32>}, {transform_indices = @transform_2, window_bounds = array<i64: 1, 32>}, {transform_indices = @transform_3, window_bounds = array<i64: 8, 32>}, {transform_indices = @transform_4, window_bounds = array<i64: 4, 32>}, {transform_indices = @transform_5, window_bounds = array<i64: 1, 12, 32>}]} {
    %c0 = arith.constant 0 : index
    %c0_0 = arith.constant 0 : index
    %0 = vector.load %arg2[%c0, %c0_0] : memref<8x16xf32, #tpu.memory_space<vmem>>, vector<8x16xf32>
    %1 = arith.truncf %0 : vector<8x16xf32> to vector<8x16xbf16>
    %c0_1 = arith.constant 0 : index
    %c0_2 = arith.constant 0 : index
    %2 = vector.load %arg3[%c0_1, %c0_2] : memref<16x32xf32, #tpu.memory_space<vmem>>, vector<16x32xf32>
    %3 = arith.truncf %2 : vector<16x32xf32> to vector<16x32xbf16>
    %cst = arith.constant dense<0.000000e+00> : vector<8x32xf32>
    %4 = tpu.matmul %1, %3, %cst {dimension_numbers = #tpu.dot_dimension_numbers<[1], [0], [0], [1], [0, 0, 1, 1], [], []>} : vector<8x16xbf16>, vector<16x32xbf16>, vector<8x32xf32> -> vector<8x32xf32>
    %5 = vector.shape_cast %4 : vector<8x32xf32> to vector<1x8x32xf32>
    %c0_3 = arith.constant 0 : index
    %c0_4 = arith.constant 0 : index
    %6 = vector.load %arg4[%c0_3, %c0_4] : memref<1x32xf32, #tpu.memory_space<vmem>>, vector<1x32xf32>
    %7 = vector.shape_cast %6 : vector<1x32xf32> to vector<1x1x32xf32>
    %8 = vector.broadcast %7 : vector<1x1x32xf32> to vector<1x8x32xf32>
    %9 = arith.addf %5, %8 : vector<1x8x32xf32>
    %c0_5 = arith.constant 0 : index
    %c0_6 = arith.constant 0 : index
    %10 = vector.load %arg5[%c0_5, %c0_6] : memref<8x32xf32, #tpu.memory_space<vmem>>, vector<8x32xf32>
    %11 = vector.shape_cast %10 : vector<8x32xf32> to vector<1x8x32xf32>
    %12 = arith.mulf %9, %11 : vector<1x8x32xf32>
    %c0_7 = arith.constant 0 : index
    %c0_8 = arith.constant 0 : index
    %c0_9 = arith.constant 0 : index
    %13 = vector.load %arg7[%c0_7, %c0_8, %c0_9] : memref<1x12x32xf32, #tpu.memory_space<vmem>>, vector<1x8x32xf32>
    tpu.vector_store %arg7[%c0_7, %c0_8, %c0_9], %12 {strides = array<i32>} : memref<1x12x32xf32, #tpu.memory_space<vmem>>, vector<1x8x32xf32>,
    %c0_10 = arith.constant 0 : index
    %c0_11 = arith.constant 0 : index
    %14 = vector.load %arg6[%c0_10, %c0_11] : memref<4x32xf32, #tpu.memory_space<vmem>>, vector<4x32xf32>
    %15 = vector.shape_cast %14 : vector<4x32xf32> to vector<1x4x32xf32>
    %c0_12 = arith.constant 0 : index
    %c8 = arith.constant 8 : index
    %c0_13 = arith.constant 0 : index
    %16 = vector.load %arg7[%c0_12, %c8, %c0_13] : memref<1x12x32xf32, #tpu.memory_space<vmem>>, vector<1x4x32xf32>
    tpu.vector_store %arg7[%c0_12, %c8, %c0_13], %15 {strides = array<i32>} : memref<1x12x32xf32, #tpu.memory_space<vmem>>, vector<1x4x32xf32>,
    return
  }
  func.func @transform_0(%arg0: i32, %arg1: i32) -> (i32, i32) {
    %c0_i32 = arith.constant 0 : i32
    %c0_i32_0 = arith.constant 0 : i32
    return %arg0, %c0_i32 : i32, i32
  }
  func.func @transform_1(%arg0: i32, %arg1: i32) -> (i32, i32) {
    %c0_i32 = arith.constant 0 : i32
    %c0_i32_0 = arith.constant 0 : i32
    return %c0_i32, %arg1 : i32, i32
  }
  func.func @transform_2(%arg0: i32, %arg1: i32) -> (i32, i32) {
    %c0_i32 = arith.constant 0 : i32
    %c0_i32_0 = arith.constant 0 : i32
    return %c0_i32, %arg1 : i32, i32
  }
  func.func @transform_3(%arg0: i32, %arg1: i32) -> (i32, i32) {
    %c0_i32 = arith.constant 0 : i32
    %c0_i32_0 = arith.constant 0 : i32
    return %c0_i32, %arg1 : i32, i32
  }
  func.func @transform_4(%arg0: i32, %arg1: i32) -> (i32, i32) {
    %c0_i32 = arith.constant 0 : i32
    %c0_i32_0 = arith.constant 0 : i32
    return %c0_i32, %arg1 : i32, i32
  }
  func.func @transform_5(%arg0: i32, %arg1: i32) -> (i32, i32, i32) {
    %c0_i32 = arith.constant 0 : i32
    %c0_i32_0 = arith.constant 0 : i32
    return %arg0, %c0_i32, %arg1 : i32, i32, i32
  }
}

</mosaic_0001>

<llo_original>
// kernel: tpu_custom_call.1
$region0: #{tpu_custom_call.1}
  #allocation0 [shape = 'u32[]', space=smem, size = 0x4, offset = 0x4, fixed_abs, tag = 'smem constant byte address 0x4 - core index']
  #allocation1 [shape = 'u32[144,128]{1,0:T(1,128)}', space=vmem, size = 0x12000, scoped, tag = 'internal scratch']
  %s0 = inlined_call_operand.hbm [shape: f32[16,16], index: 0, kind: input, shape index: {}]
  %s1 = inlined_call_operand.hbm [shape: f32[16,32], index: 1, kind: input, shape index: {}]
  %s2 = inlined_call_operand.vmem [shape: f32[1,32], index: 2, kind: input, shape index: {}]
  %s3 = inlined_call_operand.hbm [shape: f32[8,32], index: 3, kind: input, shape index: {}]
  %s4 = inlined_call_operand.vmem [shape: f32[4,32], index: 4, kind: input, shape index: {}]
  %s5 = inlined_call_operand.vmem [shape: f32[2,12,32], index: 5, kind: output, shape index: {}]
  %s6 = sld [smem:[#allocation0]]
  $region65: #{tpu_custom_call.1} parent=0
    _
  %s8 = ssub.s32 1, %s6
  %s9 = scalar_select 0, %s8, %s6
  $region1: #{tpu_custom_call.1} parent=0
    #allocation2 [shape = 'u8[8192]{0}', space=vmem, size = 0x2000, scoped, tag = 'input window, operand 0']
    #allocation3 [shape = 's32[2]{0}', space=sflag, size = 0x8, scoped, tag = 'scoped memory for tpu_custom_call.1']
    #allocation4 [shape = 'u8[8192]{0}', space=vmem, size = 0x2000, scoped, tag = 'input window, operand 1, single buffered']
    #allocation5 [shape = 's32[1]{0}', space=sflag, size = 0x4, scoped, tag = 'scoped memory for tpu_custom_call.1']
    #allocation6 [shape = 'u8[4096]{0}', space=vmem, size = 0x1000, scoped, tag = 'input window, operand 3, single buffered']
    %10 = vsyncpa [#allocation3], 0
    %s11 = scalar_lea.sflag [#allocation3], 1
    %12 = vsyncpa %s11, 0
    %13 = vsyncpa [#allocation5], 0
    loop: start=0, step=1, limit=4
    $region2: #{tpu_custom_call.1} parent=1 // loop_pre_header
      _
    $region3: #{tpu_custom_call.1} parent=1 // loop_header
      %s15 = sphi 0, %s19
      %p16 = scmp.ge.s32.totalorder %s15, 4
      %s22 = sphi 0, %s34
      %s23 = sphi 0, %s30
      %s24 = sphi 0, %s22
      %s25 = sphi 0, %s23
      %s26 = sphi 0, %s24
      %s27 = sphi 0, %s25
      %s37 = sphi 0, %s39
      %s40 = sphi 0, %s37
      %s41 = sphi 0, %s40
      %s57 = sphi 0, %s41
      %s63 = sphi 0, %s65
      %s66 = sphi 0, %s63
      %s67 = sphi 0, %s66
      %s83 = sphi 0, %s67
      %s89 = sphi 0, %s91
      %s92 = sphi 0, %s89
      %s93 = sphi 0, %s92
      %s109 = sphi 0, %s93
      %s115 = sphi 0, %s117
      %s118 = sphi 0, %s115
      %s119 = sphi 0, %s118
      %s135 = sphi 0, %s119
      %s141 = sphi 0, %s143
      %s144 = sphi 0, %s141
      %s145 = sphi 0, %s144
      %s161 = sphi 0, %s145
      %s169 = sphi 0, %s171
      %s172 = sphi 0, %s169
      %s173 = sphi 0, %s172
      %s189 = sphi 0, %s173
    $region4: #{tpu_custom_call.1} parent=1 // loop_header_branch
      %18 = sbr.rel (%p16) target = $region8
    $region5: #{tpu_custom_call.1} parent=1 // loop_body
      %s20 = ssub.s32 %s15, 1
      %s21 = ssub.s32 %s15, 2
      %s28 = sadd.s32 1, %s23
      %p29 = scmp.ge.s32.totalorder %s28, 1
      %s30 = scalar_select %p29, 0, %s28
      %s31 = sadd.s32 1, %s22
      %s32 = scalar_select %p29, %s31, %s22
      %p33 = scmp.ge.s32.totalorder %s32, 2
      %s34 = scalar_select %p33, 0, %s32
      %s35 = ssub.s32 %s22, %s34
      %p36 = scmp.eq.s32.totalorder %s35, 0
      %s38 = sadd.s32 %s37, 1
      %s39 = scalar_select %p36, %s37, %s38
      %p42 = pneg %p36
      %p43 = scmp.eq.s32.totalorder %s15, 1
      %p44 = por %p42, %p43
      %p45 = scmp.ne.s32.totalorder %s37, %s40
      %p46 = scmp.eq.s32.totalorder %s15, 0
      %p47 = por %p45, %p46
      %p48 = scmp.ne.s32.totalorder %s37, %s40
      %p49 = scmp.eq.s32.totalorder %s20, 1
      %p50 = por %p48, %p49
      %p51 = scmp.ne.s32.totalorder %s40, %s41
      %p52 = scmp.eq.s32.totalorder %s20, 0
      %p53 = por %p51, %p52
      %p54 = scmp.ne.s32.totalorder %s40, %s41
      %p55 = scmp.eq.s32.totalorder %s21, 1
      %p56 = por %p54, %p55
      %p58 = scmp.ne.s32.totalorder %s41, %s57
      %p59 = scmp.eq.s32.totalorder %s21, 0
      %p60 = por %p58, %p59
      %s61 = ssub.s32 %s23, %s30
      %p62 = scmp.eq.s32.totalorder %s61, 0
      %s64 = sadd.s32 %s63, 1
      %s65 = scalar_select %p62, %s63, %s64
      %p68 = pneg %p62
      %p69 = scmp.eq.s32.totalorder %s15, 1
      %p70 = por %p68, %p69
      %p71 = scmp.ne.s32.totalorder %s63, %s66
      %p72 = scmp.eq.s32.totalorder %s15, 0
      %p73 = por %p71, %p72
      %p74 = scmp.ne.s32.totalorder %s63, %s66
      %p75 = scmp.eq.s32.totalorder %s20, 1
      %p76 = por %p74, %p75
      %p77 = scmp.ne.s32.totalorder %s66, %s67
      %p78 = scmp.eq.s32.totalorder %s20, 0
      %p79 = por %p77, %p78
      %p80 = scmp.ne.s32.totalorder %s66, %s67
      %p81 = scmp.eq.s32.totalorder %s21, 1
      %p82 = por %p80, %p81
      %p84 = scmp.ne.s32.totalorder %s67, %s83
      %p85 = scmp.eq.s32.totalorder %s21, 0
      %p86 = por %p84, %p85
      %s87 = ssub.s32 %s23, %s30
      %p88 = scmp.eq.s32.totalorder %s87, 0
      %s90 = sadd.s32 %s89, 1
      %s91 = scalar_select %p88, %s89, %s90
      %p94 = pneg %p88
      %p95 = scmp.eq.s32.totalorder %s15, 1
      %p96 = por %p94, %p95
      %p97 = scmp.ne.s32.totalorder %s89, %s92
      %p98 = scmp.eq.s32.totalorder %s15, 0
      %p99 = por %p97, %p98
      %p100 = scmp.ne.s32.totalorder %s89, %s92
      %p101 = scmp.eq.s32.totalorder %s20, 1
      %p102 = por %p100, %p101
      %p103 = scmp.ne.s32.totalorder %s92, %s93
      %p104 = scmp.eq.s32.totalorder %s20, 0
      %p105 = por %p103, %p104
      %p106 = scmp.ne.s32.totalorder %s92, %s93
      %p107 = scmp.eq.s32.totalorder %s21, 1
      %p108 = por %p106, %p107
      %p110 = scmp.ne.s32.totalorder %s93, %s109
      %p111 = scmp.eq.s32.totalorder %s21, 0
      %p112 = por %p110, %p111
      %s113 = ssub.s32 %s23, %s30
      %p114 = scmp.eq.s32.totalorder %s113, 0
      %s116 = sadd.s32 %s115, 1
      %s117 = scalar_select %p114, %s115, %s116
      %p120 = pneg %p114
      %p121 = scmp.eq.s32.totalorder %s15, 1
      %p122 = por %p120, %p121
      %p123 = scmp.ne.s32.totalorder %s115, %s118
      %p124 = scmp.eq.s32.totalorder %s15, 0
      %p125 = por %p123, %p124
      %p126 = scmp.ne.s32.totalorder %s115, %s118
      %p127 = scmp.eq.s32.totalorder %s20, 1
      %p128 = por %p126, %p127
      %p129 = scmp.ne.s32.totalorder %s118, %s119
      %p130 = scmp.eq.s32.totalorder %s20, 0
      %p131 = por %p129, %p130
      %p132 = scmp.ne.s32.totalorder %s118, %s119
      %p133 = scmp.eq.s32.totalorder %s21, 1
      %p134 = por %p132, %p133
      %p136 = scmp.ne.s32.totalorder %s119, %s135
      %p137 = scmp.eq.s32.totalorder %s21, 0
      %p138 = por %p136, %p137
      %s139 = ssub.s32 %s23, %s30
      %p140 = scmp.eq.s32.totalorder %s139, 0
      %s142 = sadd.s32 %s141, 1
      %s143 = scalar_select %p140, %s141, %s142
      %p146 = pneg %p140
      %p147 = scmp.eq.s32.totalorder %s15, 1
      %p148 = por %p146, %p147
      %p149 = scmp.ne.s32.totalorder %s141, %s144
      %p150 = scmp.eq.s32.totalorder %s15, 0
      %p151 = por %p149, %p150
      %p152 = scmp.ne.s32.totalorder %s141, %s144
      %p153 = scmp.eq.s32.totalorder %s20, 1
      %p154 = por %p152, %p153
      %p155 = scmp.ne.s32.totalorder %s144, %s145
      %p156 = scmp.eq.s32.totalorder %s20, 0
      %p157 = por %p155, %p156
      %p158 = scmp.ne.s32.totalorder %s144, %s145
      %p159 = scmp.eq.s32.totalorder %s21, 1
      %p160 = por %p158, %p159
      %p162 = scmp.ne.s32.totalorder %s145, %s161
      %p163 = scmp.eq.s32.totalorder %s21, 0
      %p164 = por %p162, %p163
      %s165 = ssub.s32 %s22, %s34
      %s166 = ssub.s32 %s23, %s30
      %s167 = sor.u32 %s165, %s166
      %p168 = scmp.eq.s32.totalorder %s167, 0
      %s170 = sadd.s32 %s169, 1
      %s171 = scalar_select %p168, %s169, %s170
      %p174 = pneg %p168
      %p175 = scmp.eq.s32.totalorder %s15, 1
      %p176 = por %p174, %p175
      %p177 = scmp.ne.s32.totalorder %s169, %s172
      %p178 = scmp.eq.s32.totalorder %s15, 0
      %p179 = por %p177, %p178
      %p180 = scmp.ne.s32.totalorder %s169, %s172
      %p181 = scmp.eq.s32.totalorder %s20, 1
      %p182 = por %p180, %p181
      %p183 = scmp.ne.s32.totalorder %s172, %s173
      %p184 = scmp.eq.s32.totalorder %s20, 0
      %p185 = por %p183, %p184
      %p186 = scmp.ne.s32.totalorder %s172, %s173
      %p187 = scmp.eq.s32.totalorder %s21, 1
      %p188 = por %p186, %p187
      %p190 = scmp.ne.s32.totalorder %s173, %s189
      %p191 = scmp.eq.s32.totalorder %s21, 0
      %p192 = por %p190, %p191
      %p193 = scmp.le.s32.totalorder 1, %s15
      %p194 = scmp.lt.s32.totalorder %s15, 3
      %p195 = pnand %p193, %p194
      %p196 = pneg %p195
      // Predicated region
      $region9: #{tpu_custom_call.1} parent=5 // pred_check
        _
      $region10: #{tpu_custom_call.1} parent=5 // pred_check_branch
        %198 = sbr.rel (%p195) target = $region12
      $region11: #{tpu_custom_call.1} parent=5 // pred_region
        %s199 = ssub.s32 %s15, 1
        // Predicated region
        $region13: #{tpu_custom_call.1} parent=11 // pred_check
          %p200 = pneg %p79
        $region14: #{tpu_custom_call.1} parent=11 // pred_check_branch
          %202 = sbr.rel (%p200) target = $region16
        $region15: #{tpu_custom_call.1} parent=11 // pred_region
          %s204 = ssub.s32 256, 256
          %205 = vsyncadd [#allocation5], %s204
          %s206 = smul.addr %s25, 128
          %s207 = scalar_lea.hbm %s1, %s206
          %s208 = sshll.u32 [#allocation4], 4
          %s209 = int_to_ptr.vmem [resolvable:$true] %s208
          %214 = dma.hbm_to_vmem [thread:$0]  %s207, 256, %s209, [#allocation5], 128, 128, 8
        $region16: #{tpu_custom_call.1} parent=11 // pred_fallthru
          _
        // Predicated region
        $region17: #{tpu_custom_call.1} parent=11 // pred_check
          %p215 = pneg %p105
        $region18: #{tpu_custom_call.1} parent=11 // pred_check_branch
          %217 = sbr.rel (%p215) target = $region20
        $region19: #{tpu_custom_call.1} parent=11 // pred_region
          %p218 = scmp.lt.s32.totalorder %s25, 0
          %s219 = scalar_select %p218, %s25, 0
          %s220 = scalar_lea.vmem %s2, %s219
        $region20: #{tpu_custom_call.1} parent=11 // pred_fallthru
          _
        // Predicated region
        $region21: #{tpu_custom_call.1} parent=11 // pred_check
          %p221 = pneg %p131
        $region22: #{tpu_custom_call.1} parent=11 // pred_check_branch
          %223 = sbr.rel (%p221) target = $region24
        $region23: #{tpu_custom_call.1} parent=11 // pred_region
          %s225 = ssub.s32 128, 128
          %226 = vsyncadd [#allocation5], %s225
          %s227 = smul.addr %s25, 128
          %s228 = scalar_lea.hbm %s3, %s227
          %s230 = sshll.u32 [#allocation6], 4
          %s231 = int_to_ptr.vmem [resolvable:$true] %s230
          %233 = dma.hbm_to_vmem [thread:$0]  %s228, 128, %s231, [#allocation5]
        $region24: #{tpu_custom_call.1} parent=11 // pred_fallthru
          _
        // Predicated region
        $region25: #{tpu_custom_call.1} parent=11 // pred_check
          %p234 = pneg %p157
        $region26: #{tpu_custom_call.1} parent=11 // pred_check_branch
          %236 = sbr.rel (%p234) target = $region28
        $region27: #{tpu_custom_call.1} parent=11 // pred_region
          %p237 = scmp.lt.s32.totalorder %s25, 0
          %s238 = scalar_select %p237, %s25, 0
          %s239 = smul.addr %s238, 4
          %s240 = scalar_lea.vmem %s4, %s239
        $region28: #{tpu_custom_call.1} parent=11 // pred_fallthru
          _
      $region12: #{tpu_custom_call.1} parent=5 // pred_fallthru
        _
      %p241 = scmp.lt.s32.totalorder %s15, 2
      // Predicated region
      $region29: #{tpu_custom_call.1} parent=5 // pred_check
        %p242 = pneg %p241
      $region30: #{tpu_custom_call.1} parent=5 // pred_check_branch
        %244 = sbr.rel (%p242) target = $region32
      $region31: #{tpu_custom_call.1} parent=5 // pred_region
        // Predicated region
        $region33: #{tpu_custom_call.1} parent=31 // pred_check
          %p245 = pneg %p47
        $region34: #{tpu_custom_call.1} parent=31 // pred_check_branch
          %247 = sbr.rel (%p245) target = $region36
        $region35: #{tpu_custom_call.1} parent=31 // pred_region
          %s248 = sand.u32 %s37, 1
          %s249 = scalar_lea.sflag [#allocation3], %s248
          %s250 = sand.u32 %s37, 1
          %s251 = smul.addr %s250, 8
          %s252 = scalar_lea.vmem [#allocation2], %s251
          %s254 = ssub.s32 128, 128
          %255 = vsyncadd %s249, %s254
          %s256 = smul.addr %s22, 128
          %s257 = scalar_lea.hbm %s0, %s256
          %s259 = sshll.u32 %s252, 4
          %s260 = int_to_ptr.vmem [resolvable:$true] %s259
          %262 = dma.hbm_to_vmem [thread:$0]  %s257, 128, %s260, %s249
        $region36: #{tpu_custom_call.1} parent=31 // pred_fallthru
          _
      $region32: #{tpu_custom_call.1} parent=5 // pred_fallthru
        _
      %p263 = scmp.le.s32.totalorder 1, %s15
      %p264 = scmp.lt.s32.totalorder %s15, 3
      %p265 = pnand %p263, %p264
      %p266 = pneg %p265
      // Predicated region
      $region37: #{tpu_custom_call.1} parent=5 // pred_check
        _
      $region38: #{tpu_custom_call.1} parent=5 // pred_check_branch
        %268 = sbr.rel (%p265) target = $region40
      $region39: #{tpu_custom_call.1} parent=5 // pred_region
        %s269 = ssub.s32 %s15, 1
        %s270 = sand.u32 %s40, 1
        %s271 = scalar_lea.sflag [#allocation3], %s270
        %s272 = sand.u32 %s40, 1
        %s273 = smul.addr %s272, 8
        %s274 = scalar_lea.vmem [#allocation2], %s273
        // Predicated region
        $region41: #{tpu_custom_call.1} parent=39 // pred_check
          %p275 = pneg %p53
        $region42: #{tpu_custom_call.1} parent=39 // pred_check_branch
          %277 = sbr.rel (%p275) target = $region44
        $region43: #{tpu_custom_call.1} parent=39 // pred_region
          %278 = dma.done %s271, 128
        $region44: #{tpu_custom_call.1} parent=39 // pred_fallthru
          _
        // Predicated region
        $region45: #{tpu_custom_call.1} parent=39 // pred_check
          %p279 = pneg %p79
        $region46: #{tpu_custom_call.1} parent=39 // pred_check_branch
          %281 = sbr.rel (%p279) target = $region48
        $region47: #{tpu_custom_call.1} parent=39 // pred_region
          %282 = dma.done [#allocation5], 256
        $region48: #{tpu_custom_call.1} parent=39 // pred_fallthru
          _
        // Predicated region
        $region49: #{tpu_custom_call.1} parent=39 // pred_check
          %p283 = pneg %p131
        $region50: #{tpu_custom_call.1} parent=39 // pred_check_branch
          %285 = sbr.rel (%p283) target = $region52
        $region51: #{tpu_custom_call.1} parent=39 // pred_region
          %286 = dma.done [#allocation5], 128
        $region52: #{tpu_custom_call.1} parent=39 // pred_fallthru
          _
        %s287 = sand.u32 %s40, 1
        %s288 = scalar_lea.sflag [#allocation3], %s287
        %s289 = sand.u32 %s40, 1
        %s290 = smul.addr %s289, 8
        %s291 = scalar_lea.vmem [#allocation2], %s290
        %p292 = pneg %p53
        %p293 = pneg %p50
        %p294 = pneg %p79
        %p295 = pneg %p76
        %p296 = scmp.lt.s32.totalorder %s25, 0
        %s297 = scalar_select %p296, %s25, 0
        %s298 = scalar_lea.vmem %s2, %s297
        %p299 = pneg %p105
        %p300 = pneg %p102
        %p301 = pneg %p131
        %p302 = pneg %p128
        %p303 = scmp.lt.s32.totalorder %s25, 0
        %s304 = scalar_select %p303, %s25, 0
        %s305 = smul.addr %s304, 4
        %s306 = scalar_lea.vmem %s4, %s305
        %p307 = pneg %p157
        %p308 = pneg %p154
        %p309 = pneg %p185
        %p310 = pneg %p182
        %p311 = scmp.lt.s32.totalorder %s24, 1
        %s312 = scalar_select %p311, %s24, 1
        %p313 = scmp.lt.s32.totalorder %s25, 0
        %s314 = scalar_select %p313, %s25, 0
        %s315 = smul.addr %s312, 2
        %s316 = sadd.s32 %s314, %s315
        %s317 = smul.addr %s316, 8
        %s318 = scalar_lea.vmem %s5, %s317
        %p319 = scmp.lt.s32.totalorder %s25, 0
        %s320 = scalar_select %p319, %s25, 0
        %s321 = scalar_lea.vmem %s2, %s320
        %p322 = scmp.lt.s32.totalorder %s25, 0
        %s323 = scalar_select %p322, %s25, 0
        %s324 = smul.addr %s323, 4
        %s325 = scalar_lea.vmem %s4, %s324
        %p326 = scmp.lt.s32.totalorder %s24, 1
        %s327 = scalar_select %p326, %s24, 1
        %p328 = scmp.lt.s32.totalorder %s25, 0
        %s329 = scalar_select %p328, %s25, 0
        %s330 = smul.addr %s327, 2
        %s331 = sadd.s32 %s329, %s330
        %s332 = smul.addr %s331, 8
        %s333 = scalar_lea.vmem %s5, %s332
        %v335 = vld [vmem:[%s274] sm:$0xff]
        %v336 = vpack.c.bf16 %v335, %v335
        %v337 = vld [vmem:[#allocation4] sm:$0xff]
        %v338 = vld [vmem:[#allocation4 + $0x8] sm:$0xff]
        %v339 = vpack.c.bf16 %v338, %v337
        %vm340 = vcmask 130048
        %v342 = vsel %vm340, %v336, 0
        %344 = vmatprep.subr.bf16.mxu0 0
        %345 = vmatpush1.bf16.msra.mxu0 0
        %346 = vmatprep.subr.bf16.mxu0 0
        %347 = vmatpush1.bf16.msra.mxu0 0
        %348 = vmatprep.subr.bf16.mxu0 0
        %349 = vmatpush1.bf16.msra.mxu0 0
        %350 = vmatprep.subr.bf16.mxu0 0
        %351 = vmatpush1.bf16.msra.mxu0 0
        %352 = vmatprep.subr.bf16.mxu0 0
        %353 = vmatpush1.bf16.msra.mxu0 0
        %354 = vmatprep.subr.bf16.mxu0 0
        %355 = vmatpush1.bf16.msra.mxu0 0
        %356 = vmatprep.subr.bf16.mxu0 0
        %357 = vmatpush1.bf16.msra.mxu0 0
        %358 = vmatprep.subr.bf16.mxu0 0
        %359 = vmatpush1.bf16.msra.mxu0 %v339
        %360 = vmatprep.subr.bf16.mxu0 0
        %361 = vmatpush2.bf16.msra.mxu0 0
        %362 = vmatprep.subr.bf16.mxu0 0
        %363 = vmatpush2.bf16.msra.mxu0 0
        %364 = vmatprep.subr.bf16.mxu0 0
        %365 = vmatpush2.bf16.msra.mxu0 0
        %366 = vmatprep.subr.bf16.mxu0 0
        %367 = vmatpush2.bf16.msra.mxu0 0
        %368 = vmatprep.subr.bf16.mxu0 0
        %369 = vmatpush2.bf16.msra.mxu0 0
        %370 = vmatprep.subr.bf16.mxu0 0
        %371 = vmatpush2.bf16.msra.mxu0 0
        %372 = vmatprep.subr.bf16.mxu0 0
        %373 = vmatpush2.bf16.msra.mxu0 0
        %374 = vmatprep.subr.bf16.mxu0 0
        %375 = vmatpush2.bf16.msra.mxu0 0
        %376 = vmatprep.mubr.bf16.mxu0 0
        %377 = vmatmul.mubr.bf16.gmra.mxu0 %v342
        %v378 = vpop.f32.mrf.mxu0
        %v379 = vadd.f32 0.0, %v378
        %v380 = vpop.f32.mrf.mxu0
        %v381 = vpop.f32.mrf.mxu0
        %v382 = vpop.f32.mrf.mxu0
        %383 = vdwg.mxu0
        %v384 = vld [vmem:[%s321] sm:$0x1]
        %v386 = vlaneseq
        %v387 = vshrl.u32 %v386, 7
        %v388 = vsub.s32 0, %v387
        %v389 = vrot.slane %v384, %v388
        %v391 = vadd.f32 %v379, %v389
        %v392 = vld [vmem:[#allocation6] sm:$0xff]
        %v393 = vmul.f32 %v391, %v392
        %vm394 = vcmask 261120
        %395 = vst.msk [vmem:[%s333] sm:$0xff] %vm394, %v393
        %v396 = vld [vmem:[%s325] sm:$0xf]
        %vm397 = vcmask 257024
        %398 = vst.msk [vmem:[%s333 + $0x8] sm:$0xf] %vm397, %v396
        %p399 = scmp.lt.s32.totalorder %s24, 1
        %s400 = scalar_select %p399, %s24, 1
        %p401 = scmp.lt.s32.totalorder %s25, 0
        %s402 = scalar_select %p401, %s25, 0
        %s403 = smul.addr %s400, 2
        %s404 = sadd.s32 %s402, %s403
        %s405 = smul.addr %s404, 8
        %s406 = scalar_lea.vmem %s5, %s405
        // Predicated region
        $region53: #{tpu_custom_call.1} parent=39 // pred_check
          %p407 = pneg %p182
        $region54: #{tpu_custom_call.1} parent=39 // pred_check_branch
          %409 = sbr.rel (%p407) target = $region56
        $region55: #{tpu_custom_call.1} parent=39 // pred_region
          _
        $region56: #{tpu_custom_call.1} parent=39 // pred_fallthru
          _
      $region40: #{tpu_custom_call.1} parent=5 // pred_fallthru
        _
      %p410 = scmp.le.s32.totalorder 2, %s15
      // Predicated region
      $region57: #{tpu_custom_call.1} parent=5 // pred_check
        %p411 = pneg %p410
      $region58: #{tpu_custom_call.1} parent=5 // pred_check_branch
        %413 = sbr.rel (%p411) target = $region60
      $region59: #{tpu_custom_call.1} parent=5 // pred_region
        %s414 = ssub.s32 %s15, 2
        // Predicated region
        $region61: #{tpu_custom_call.1} parent=59 // pred_check
          %p415 = pneg %p188
        $region62: #{tpu_custom_call.1} parent=59 // pred_check_branch
          %417 = sbr.rel (%p415) target = $region64
        $region63: #{tpu_custom_call.1} parent=59 // pred_region
          %p418 = scmp.lt.s32.totalorder %s26, 1
          %s419 = scalar_select %p418, %s26, 1
          %p420 = scmp.lt.s32.totalorder %s27, 0
          %s421 = scalar_select %p420, %s27, 0
          %s422 = smul.addr %s419, 2
          %s423 = sadd.s32 %s421, %s422
          %s424 = smul.addr %s423, 8
          %s425 = scalar_lea.vmem %s5, %s424
        $region64: #{tpu_custom_call.1} parent=59 // pred_fallthru
          _
      $region60: #{tpu_custom_call.1} parent=5 // pred_fallthru
        _
    $region6: #{tpu_custom_call.1} parent=1 // loop_footer
      %s19 = sadd.s32 1, %s15
    $region7: #{tpu_custom_call.1} parent=1 // loop_footer_branch
      %14 = sbr.rel target = $region3
    $region8: #{tpu_custom_call.1} parent=1 // loop_exit
      _
    %426 = vsyncpa [#allocation3], 1
    %s427 = scalar_lea.sflag [#allocation3], 1
    %428 = vsyncpa %s427, 1
    %429 = vsyncpa [#allocation5], 1

</llo_original>
